<compile_context>
chip_gen: v7x
topology: tpu7x:2x2x1
jax: 0.10.0
libtpu: 0.0.40
codegen_flags: <defaults>
</compile_context>

<pallas_src>
import jax
import jax.numpy as jnp
from jax import lax
from jax.experimental import pallas as pl
from jax.experimental.pallas import tpu as pltpu

BN_EPS = 1e-5


def _roundup(a, b):
    return (a + b - 1) // b * b


def _tile_bytes(rows, cols, itemsize):
    return _roundup(max(rows, 1), 8) * _roundup(max(cols, 1), 128) * itemsize


def _choose_tk(pn, hp):
    """Pick the K tile for Linear-1 so one (tk, Hp) bf16 W1 tile stays small."""
    budget = 8 * 1024 * 1024  # per-buffer W1 tile budget (double-buffered -> 16 MiB)
    if pn * hp * 2 <= budget:
        return pn
    # Prefer 256-multiples (v6e/v7x MXU is 2x256^2), fall back to 128.
    for tk in (4096, 2048, 1024, 512, 256, 128):
        if pn % tk == 0 and tk * hp * 2 <= budget:
            return tk
    # TODO(synk): pad pn (and x) to a 256 multiple for large non-divisible pn.
    return pn


def pooler_head_kernel(x_ref, w1_ref, vecs_ref, w2_ref, o_ref, acc_ref):
    """Fused Flatten->Linear->BatchNorm->ReLU->Linear forward.

    Grid: (num_k,) over the pn (K) axis of Linear-1.

    x_ref    : [B, tk]      f32   (cast to bf16 in-kernel for the MXU)
    w1_ref   : [tk, Hp]     bf16  (pre-transposed [in, out], zero-padded cols)
    vecs_ref : [3, W]       f32   rows: gamma (Hp, zero-padded), beta (Hp), b2 (D_out)
    w2_ref   : [Hp, D_out]  bf16  (pre-transposed [in, out], zero-padded rows)
    o_ref    : [B, D_out]   f32
    acc_ref  : [B, Hp]      f32 scratch accumulator (lives across the K grid)
    """
    k = pl.program_id(0)
    nk = pl.num_programs(0)

    @pl.when(k == 0)
    def _():
        acc_ref[...] = jnp.zeros_like(acc_ref)

    # Linear 1 partial product on the MXU (bf16 operands, f32 accumulation).
    # The Linear-1 bias is omitted on purpose: a per-feature constant feeding
    # straight into training-mode BatchNorm1d is cancelled by the mean
    # subtraction.
    acc_ref[...] += jnp.dot(
        x_ref[...].astype(jnp.bfloat16), w1_ref[...],
        preferred_element_type=jnp.float32)

    @pl.when(k == nk - 1)
    def _():
        hp = w1_ref.shape[1]
        d_out = w2_ref.shape[1]
        h = acc_ref[...]
        b = h.shape[0]

        vecs = vecs_ref[...]
        gamma = vecs[0:1, :hp]   # zero on padded lanes -> padded lanes stay 0
        beta = vecs[1:2, :hp]
        b2 = vecs[2:3, :d_out]

        # BatchNorm1d (training mode): batch statistics, biased variance,
        # eps = 1e-5.  One pass: sum and sum-of-squares, then fold the affine
        # into per-feature scale/shift so the [B, Hp] slab only sees one
        # multiply and one add.
        inv_b = 1.0 / b
        s = jnp.sum(h, axis=0, keepdims=True)
        s2 = jnp.sum(h * h, axis=0, keepdims=True)
        mean = s * inv_b
        var = jnp.maximum(s2 * inv_b - mean * mean, 0.0)
        scale = gamma * lax.rsqrt(var + BN_EPS)   # [1, Hp]
        shift = beta - mean * scale               # [1, Hp]

        hn = jnp.maximum(h * scale + shift, 0.0)  # normalize + ReLU

        # Linear 2 on the MXU. Dropout(p=0) is identity.
        o_ref[...] = (jnp.dot(hn.astype(jnp.bfloat16), w2_ref[...],
                              preferred_element_type=jnp.float32)
                      + b2).astype(o_ref.dtype)


def pack_pooler_params(w1, b1, gamma, beta, w2, b2):
    """One-time parameter packing (do this at load time, NOT per call).

    b1 is accepted for parameter parity with nn.Linear but never used: it is
    mathematically cancelled by the BatchNorm batch-statistic mean subtraction.
    """
    del b1  # cancelled by BatchNorm (training-mode batch statistics)

    pn, h = w1.shape
    d_out = w2.shape[1]
    # Pad the hidden dim to a 128-lane multiple so BN/ReLU are lane-dense and
    # Linear-2 gets a full-K MXU tile.  Padded gamma = 0 => padded lanes are
    # hard-zeroed by the BN scale (no rsqrt(eps) amplification), and W2's
    # padded rows are zero, so the result is unchanged.
    hp = _roundup(h, 128)
    w = max(hp, _roundup(d_out, 128))

    w1p = jnp.zeros((pn, hp), jnp.bfloat16).at[:, :h].set(w1.astype(jnp.bfloat16))
    w2p = jnp.zeros((hp, d_out), jnp.bfloat16).at[:h, :].set(w2.astype(jnp.bfloat16))

    vecs = jnp.zeros((3, w), jnp.float32)
    vecs = vecs.at[0, :h].set(gamma.reshape(-1).astype(jnp.float32))
    vecs = vecs.at[1, :h].set(beta.reshape(-1).astype(jnp.float32))
    vecs = vecs.at[2, :d_out].set(b2.reshape(-1).astype(jnp.float32))

    return {"w1p": w1p, "w2p": w2p, "vecs": vecs,
            "pn": pn, "H": h, "Hp": hp, "D_out": d_out}


def pooler_head(x, params):
    """Hot path: x [B, n_vars, d_model] -> [B, D_out] using pre-packed params."""
    b = x.shape[0]
    pn = params["pn"]
    hp = params["Hp"]
    d_out = params["D_out"]
    w1p, w2p, vecs = params["w1p"], params["w2p"], params["vecs"]
    w = vecs.shape[1]

    assert x.shape[1] * x.shape[2] == pn, "x inner dims must flatten to pn"

    # Flatten(start_dim=-2): row-major reshape == torch.Flatten; stays f32
    # (the bf16 cast happens in-VMEM inside the kernel).
    x2d = x.reshape(b, pn)

    tk = _choose_tk(pn, hp)
    nk = pn // tk

    # VMEM budget for the actual tile footprint (+ headroom), so realistic
    # iTransformer sizes neither trip the scoped default nor blow v7x's VMEM.
    vmem_bytes = (
        2 * _tile_bytes(b, tk, 4)          # x tile (f32), double-buffered
        + 2 * _tile_bytes(tk, hp, 2)       # W1 tile (bf16)
        + 2 * _tile_bytes(3, w, 4)         # packed vectors
        + 2 * _tile_bytes(hp, d_out, 2)    # W2 (bf16)
        + 2 * _tile_bytes(b, d_out, 4)     # output
        + _tile_bytes(b, hp, 4)            # accumulator scratch
        + (2 << 20)                        # compiler-internal headroom
    )
    vmem_limit = int(min(max(vmem_bytes, 4 << 20), 64 << 20))

    flops = 2 * b * pn * hp + 2 * b * hp * d_out
    bytes_accessed = (b * pn * 4 + pn * hp * 2 + 3 * w * 4
                      + hp * d_out * 2 + b * d_out * 4)
    cost = pl.CostEstimate(flops=flops, transcendentals=hp,
                           bytes_accessed=bytes_accessed)

    grid_spec = pltpu.PrefetchScalarGridSpec(
        num_scalar_prefetch=0,
        grid=(nk,),
        in_specs=[
            pl.BlockSpec((b, tk), lambda k: (0, k)),      # x K-tiles
            pl.BlockSpec((tk, hp), lambda k: (k, 0)),     # W1 K-tiles
            pl.BlockSpec((3, w), lambda k: (0, 0)),       # vecs (resident)
            pl.BlockSpec((hp, d_out), lambda k: (0, 0)),  # W2 (resident)
        ],
        out_specs=pl.BlockSpec((b, d_out), lambda k: (0, 0)),
        scratch_shapes=[pltpu.VMEM((b, hp), jnp.float32)],
    )

    return pl.pallas_call(
        pooler_head_kernel,
        out_shape=jax.ShapeDtypeStruct((b, d_out), jnp.float32),
        grid_spec=grid_spec,
        compiler_params=pltpu.CompilerParams(
            dimension_semantics=("arbitrary",),
            vmem_limit_bytes=vmem_limit),
        cost_estimate=cost,
    )(x2d, w1p, vecs, w2p)


def reference(x, w1, b1, gamma, beta, w2, b2):
    """Pure-JAX f32 reference mirroring the PyTorch module (incl. b1)."""
    b = x.shape[0]
    h = x.reshape(b, -1).astype(jnp.float32) @ w1 + b1
    mean = jnp.mean(h, axis=0, keepdims=True)
    var = jnp.mean((h - mean) ** 2, axis=0, keepdims=True)
    h = (h - mean) * lax.rsqrt(var + BN_EPS) * gamma + beta
    h = jnp.maximum(h, 0.0)
    return h @ w2 + b2


if __name__ == "__main__":
    # Small shapes consistent with the module: n_vars=4, d_model=32 -> pn=128.
    B, n_vars, d_model = 8, 4, 32
    pn = n_vars * d_model          # 128
    hidden = pn // 2               # 64
    dimension = 128                # fixed in the module

    key = jax.random.PRNGKey(0)
    kx, k1, kb1, kg, kbt, k2, kb2 = jax.random.split(key, 7)

    x = jax.random.normal(kx, (B, n_vars, d_model), dtype=jnp.float32)

    # Deterministic synthetic parameters (torch-default-like scale).
    w1 = jax.random.uniform(k1, (pn, hidden), jnp.float32,
                            minval=-1.0, maxval=1.0) / jnp.sqrt(pn)
    b1 = jax.random.uniform(kb1, (1, hidden), jnp.float32,
                            minval=-1.0, maxval=1.0) / jnp.sqrt(pn)
    gamma = 1.0 + 0.1 * jax.random.normal(kg, (1, hidden), jnp.float32)
    beta = 0.1 * jax.random.normal(kbt, (1, hidden), jnp.float32)
    w2 = jax.random.uniform(k2, (hidden, dimension), jnp.float32,
                            minval=-1.0, maxval=1.0) / jnp.sqrt(hidden)
    b2 = jax.random.uniform(kb2, (1, dimension), jnp.float32,
                            minval=-1.0, maxval=1.0) / jnp.sqrt(hidden)

    # One-time packing (out of the hot path).
    packed = jax.tree_util.tree_map(
        lambda v: jax.block_until_ready(v) if isinstance(v, jax.Array) else v,
        pack_pooler_params(w1, b1, gamma, beta, w2, b2))

    out = jax.block_until_ready(pooler_head(x, packed))
    ref = reference(x, w1, b1, gamma, beta, w2, b2)

    assert out.shape == (B, dimension), out.shape
    # Tolerance loosened vs the f32 reference because matmul operands are
    # bf16 (accumulation is f32); BN math is in f32.
    max_err = float(jnp.max(jnp.abs(out - ref)))
    assert jnp.allclose(out, ref, atol=5e-2, rtol=5e-2), f"max_err={max_err}"

    print("KERNEL_OK")
</pallas_src>

<mosaic_0001>
module attributes {stable_mosaic.version = 11 : i64} {
  func.func @pooler_head_kernel(%arg0: i32, %arg1: memref<8x128xf32, #tpu.memory_space<vmem>>, %arg2: memref<128x128xbf16, #tpu.memory_space<vmem>>, %arg3: memref<3x128xf32, #tpu.memory_space<vmem>>, %arg4: memref<128x128xbf16, #tpu.memory_space<vmem>>, %arg5: memref<8x128xf32, #tpu.memory_space<vmem>>, %arg6: memref<8x128xf32, #tpu.memory_space<vmem>>) attributes {dimension_semantics = [#tpu.dimension_semantics<arbitrary>], iteration_bounds = array<i64: 1>, scalar_prefetch = 0 : i64, scratch_operands = 1 : i64, tpu.core_type = #tpu.core_type<tc>, window_params = [{transform_indices = @transform_0, window_bounds = array<i64: 8, 128>}, {transform_indices = @transform_1, window_bounds = array<i64: 128, 128>}, {pipeline_mode = #tpu.pipeline_mode<synchronous>, transform_indices = @transform_2, window_bounds = array<i64: 3, 128>}, {pipeline_mode = #tpu.pipeline_mode<synchronous>, transform_indices = @transform_3, window_bounds = array<i64: 128, 128>}, {pipeline_mode = #tpu.pipeline_mode<synchronous>, transform_indices = @transform_4, window_bounds = array<i64: 8, 128>}]} {
    %c0_i32 = arith.constant 0 : i32
    %0 = arith.cmpi eq, %arg0, %c0_i32 : i32
    %1 = arith.extui %0 : i1 to i32
    %c0_i32_0 = arith.constant 0 : i32
    %2 = arith.cmpi ne, %1, %c0_i32_0 : i32
    scf.if %2 {
      %cst_10 = arith.constant 0.000000e+00 : f32
      %13 = vector.broadcast %cst_10 : f32 to vector<8x128xf32>
      %c0_11 = arith.constant 0 : index
      %c0_12 = arith.constant 0 : index
      %14 = vector.load %arg6[%c0_11, %c0_12] : memref<8x128xf32, #tpu.memory_space<vmem>>, vector<8x128xf32>
      tpu.vector_store %arg6[%c0_11, %c0_12], %13 {strides = array<i32>} : memref<8x128xf32, #tpu.memory_space<vmem>>, vector<8x128xf32>,
    } else {
    }
    %c0 = arith.constant 0 : index
    %c0_1 = arith.constant 0 : index
    %3 = vector.load %arg6[%c0, %c0_1] : memref<8x128xf32, #tpu.memory_space<vmem>>, vector<8x128xf32>
    %c0_2 = arith.constant 0 : index
    %c0_3 = arith.constant 0 : index
    %4 = vector.load %arg1[%c0_2, %c0_3] : memref<8x128xf32, #tpu.memory_space<vmem>>, vector<8x128xf32>
    %5 = arith.truncf %4 : vector<8x128xf32> to vector<8x128xbf16>
    %c0_4 = arith.constant 0 : index
    %c0_5 = arith.constant 0 : index
    %6 = vector.load %arg2[%c0_4, %c0_5] : memref<128x128xbf16, #tpu.memory_space<vmem>>, vector<128x128xbf16>
    %cst = arith.constant dense<0.000000e+00> : vector<8x128xf32>
    %7 = tpu.matmul %5, %6, %cst {dimension_numbers = #tpu.dot_dimension_numbers<[1], [0], [0], [1], [0, 0, 1, 1], [], []>} : vector<8x128xbf16>, vector<128x128xbf16>, vector<8x128xf32> -> vector<8x128xf32>
    %8 = arith.addf %3, %7 : vector<8x128xf32>
    %c0_6 = arith.constant 0 : index
    %c0_7 = arith.constant 0 : index
    %9 = vector.load %arg6[%c0_6, %c0_7] : memref<8x128xf32, #tpu.memory_space<vmem>>, vector<8x128xf32>
    tpu.vector_store %arg6[%c0_6, %c0_7], %8 {strides = array<i32>} : memref<8x128xf32, #tpu.memory_space<vmem>>, vector<8x128xf32>,
    %c0_i32_8 = arith.constant 0 : i32
    %10 = arith.cmpi eq, %arg0, %c0_i32_8 : i32
    %11 = arith.extui %10 : i1 to i32
    %c0_i32_9 = arith.constant 0 : i32
    %12 = arith.cmpi ne, %11, %c0_i32_9 : i32
    scf.if %12 {
      %c0_10 = arith.constant 0 : index
      %c0_11 = arith.constant 0 : index
      %13 = vector.load %arg6[%c0_10, %c0_11] : memref<8x128xf32, #tpu.memory_space<vmem>>, vector<8x128xf32>
      %c0_12 = arith.constant 0 : index
      %c0_13 = arith.constant 0 : index
      %14 = vector.load %arg3[%c0_12, %c0_13] : memref<3x128xf32, #tpu.memory_space<vmem>>, vector<3x128xf32>
      %15 = vector.extract_strided_slice %14 {offsets = [0, 0], sizes = [1, 128], strides = [1, 1]} : vector<3x128xf32> to vector<1x128xf32>
      %16 = vector.extract_strided_slice %14 {offsets = [1, 0], sizes = [1, 128], strides = [1, 1]} : vector<3x128xf32> to vector<1x128xf32>
      %17 = vector.extract_strided_slice %14 {offsets = [2, 0], sizes = [1, 128], strides = [1, 1]} : vector<3x128xf32> to vector<1x128xf32>
      %cst_14 = arith.constant dense<0.000000e+00> : vector<128xf32>
      %18 = vector.multi_reduction <add>, %13, %cst_14 [0] : vector<8x128xf32> to vector<128xf32>
      %19 = vector.shape_cast %18 : vector<128xf32> to vector<1x128xf32>
      %20 = arith.mulf %13, %13 : vector<8x128xf32>
      %cst_15 = arith.constant dense<0.000000e+00> : vector<128xf32>
      %21 = vector.multi_reduction <add>, %20, %cst_15 [0] : vector<8x128xf32> to vector<128xf32>
      %22 = vector.shape_cast %21 : vector<128xf32> to vector<1x128xf32>
      %cst_16 = arith.constant 1.250000e-01 : f32
      %23 = vector.broadcast %cst_16 : f32 to vector<1x128xf32>
      %24 = arith.mulf %19, %23 : vector<1x128xf32>
      %cst_17 = arith.constant 1.250000e-01 : f32
      %25 = vector.broadcast %cst_17 : f32 to vector<1x128xf32>
      %26 = arith.mulf %22, %25 : vector<1x128xf32>
      %27 = arith.mulf %24, %24 : vector<1x128xf32>
      %28 = arith.subf %26, %27 : vector<1x128xf32>
      %cst_18 = arith.constant 0.000000e+00 : f32
      %29 = vector.broadcast %cst_18 : f32 to vector<1x128xf32>
      %30 = arith.maximumf %28, %29 : vector<1x128xf32>
      %cst_19 = arith.constant 9.99999974E-6 : f32
      %31 = vector.broadcast %cst_19 : f32 to vector<1x128xf32>
      %32 = arith.addf %30, %31 : vector<1x128xf32>
      %33 = math.rsqrt %32 : vector<1x128xf32>
      %34 = arith.mulf %15, %33 : vector<1x128xf32>
      %35 = arith.mulf %24, %34 : vector<1x128xf32>
      %36 = arith.subf %16, %35 : vector<1x128xf32>
      %37 = vector.broadcast %34 : vector<1x128xf32> to vector<8x128xf32>
      %38 = arith.mulf %13, %37 : vector<8x128xf32>
      %39 = vector.broadcast %36 : vector<1x128xf32> to vector<8x128xf32>
      %40 = arith.addf %38, %39 : vector<8x128xf32>
      %cst_20 = arith.constant 0.000000e+00 : f32
      %41 = vector.broadcast %cst_20 : f32 to vector<8x128xf32>
      %42 = arith.maximumf %40, %41 : vector<8x128xf32>
      %43 = arith.truncf %42 : vector<8x128xf32> to vector<8x128xbf16>
      %c0_21 = arith.constant 0 : index
      %c0_22 = arith.constant 0 : index
      %44 = vector.load %arg4[%c0_21, %c0_22] : memref<128x128xbf16, #tpu.memory_space<vmem>>, vector<128x128xbf16>
      %cst_23 = arith.constant dense<0.000000e+00> : vector<8x128xf32>
      %45 = tpu.matmul %43, %44, %cst_23 {dimension_numbers = #tpu.dot_dimension_numbers<[1], [0], [0], [1], [0, 0, 1, 1], [], []>} : vector<8x128xbf16>, vector<128x128xbf16>, vector<8x128xf32> -> vector<8x128xf32>
      %46 = vector.broadcast %17 : vector<1x128xf32> to vector<8x128xf32>
      %47 = arith.addf %45, %46 : vector<8x128xf32>
      %c0_24 = arith.constant 0 : index
      %c0_25 = arith.constant 0 : index
      %48 = vector.load %arg5[%c0_24, %c0_25] : memref<8x128xf32, #tpu.memory_space<vmem>>, vector<8x128xf32>
      tpu.vector_store %arg5[%c0_24, %c0_25], %47 {strides = array<i32>} : memref<8x128xf32, #tpu.memory_space<vmem>>, vector<8x128xf32>,
    } else {
    }
    return
  }
  func.func @transform_0(%arg0: i32) -> (i32, i32) {
    %c0_i32 = arith.constant 0 : i32
    %c0_i32_0 = arith.constant 0 : i32
    return %c0_i32, %arg0 : i32, i32
  }
  func.func @transform_1(%arg0: i32) -> (i32, i32) {
    %c0_i32 = arith.constant 0 : i32
    %c0_i32_0 = arith.constant 0 : i32
    return %arg0, %c0_i32 : i32, i32
  }
  func.func @transform_2(%arg0: i32) -> (i32, i32) {
    %c0_i32 = arith.constant 0 : i32
    %c0_i32_0 = arith.constant 0 : i32
    %c0_i32_1 = arith.constant 0 : i32
    return %c0_i32, %c0_i32_0 : i32, i32
  }
  func.func @transform_3(%arg0: i32) -> (i32, i32) {
    %c0_i32 = arith.constant 0 : i32
    %c0_i32_0 = arith.constant 0 : i32
    %c0_i32_1 = arith.constant 0 : i32
    return %c0_i32, %c0_i32_0 : i32, i32
  }
  func.func @transform_4(%arg0: i32) -> (i32, i32) {
    %c0_i32 = arith.constant 0 : i32
    %c0_i32_0 = arith.constant 0 : i32
    %c0_i32_1 = arith.constant 0 : i32
    return %c0_i32, %c0_i32_0 : i32, i32
  }
}

</mosaic_0001>

<llo_original>
// kernel: tpu_custom_call.1
$region0: #{tpu_custom_call.1}
  #allocation0 [shape = 'u32[]', space=smem, size = 0x4, offset = 0x4, fixed_abs, tag = 'smem constant byte address 0x4 - core index']
  #allocation1 [shape = 'u32[144,128]{1,0:T(1,128)}', space=vmem, size = 0x12000, scoped, tag = 'internal scratch']
  #allocation2 [shape = 'f32[8,128]{1,0:T(8,128)}', space=vmem, size = 0x1000, scoped, tag = 'scratch operand']
  %s0 = inlined_call_operand.hbm [shape: f32[8,128], index: 0, kind: input, shape index: {}]
  %s1 = inlined_call_operand.hbm [shape: bf16[128,128], index: 1, kind: input, shape index: {}]
  %s2 = inlined_call_operand.vmem [shape: f32[3,128], index: 2, kind: input, shape index: {}]
  %s3 = inlined_call_operand.hbm [shape: bf16[128,128], index: 3, kind: input, shape index: {}]
  %s4 = inlined_call_operand.hbm [shape: f32[8,128], index: 4, kind: output, shape index: {}]
  %s5 = sld [smem:[#allocation0]]
  $region46: #{tpu_custom_call.1} parent=0
    _
  %s7 = ssub.s32 1, %s5
  %s8 = scalar_select 0, %s7, %s5
  $region1: #{tpu_custom_call.1} parent=0
    #allocation3 [shape = 'u8[4096]{0}', space=vmem, size = 0x1000, scoped, tag = 'input window, operand 0, single buffered']
    #allocation4 [shape = 's32[1]{0}', space=sflag, size = 0x4, scoped, tag = 'scoped memory for tpu_custom_call.1']
    #allocation5 [shape = 's32[1]{0}', space=sflag, size = 0x4, scoped, tag = 'scoped memory for tpu_custom_call.1']
    #allocation6 [shape = 'u8[32768]{0}', space=vmem, size = 0x8000, scoped, tag = 'input window, operand 1, single buffered']
    #allocation7 [shape = 's32[1]{0}', space=sflag, size = 0x4, scoped, tag = 'scoped memory for tpu_custom_call.1']
    #allocation8 [shape = 'u8[32768]{0}', space=vmem, size = 0x8000, scoped, tag = 'input window, operand 3, single buffered']
    #allocation9 [shape = 'u8[4096]{0}', space=vmem, size = 0x1000, scoped, tag = 'output window, operand 0, single buffered']
    %9 = vsyncpa [#allocation4], 0
    %10 = vsyncpa [#allocation7], 0
    %11 = vsyncpa [#allocation5], 0
    // Predicated region
    $region2: #{tpu_custom_call.1} parent=1 // pred_check
      _
    $region3: #{tpu_custom_call.1} parent=1 // pred_check_branch
      %13 = sbr.rel (0) target = $region5
    $region4: #{tpu_custom_call.1} parent=1 // pred_region
      %s15 = ssub.s32 128, 128
      %16 = vsyncadd [#allocation4], %s15
      %s18 = sshll.u32 [#allocation3], 4
      %s19 = int_to_ptr.vmem [resolvable:$true] %s18
      %21 = dma.hbm_to_vmem [thread:$0]  %s0, 128, %s19, [#allocation4]
    $region5: #{tpu_custom_call.1} parent=1 // pred_fallthru
      _
    // Predicated region
    $region6: #{tpu_custom_call.1} parent=1 // pred_check
      _
    $region7: #{tpu_custom_call.1} parent=1 // pred_check_branch
      %23 = sbr.rel (0) target = $region9
    $region8: #{tpu_custom_call.1} parent=1 // pred_region
      %s25 = ssub.s32 1024, 1024
      %26 = vsyncadd [#allocation7], %s25
      %s27 = sshll.u32 [#allocation6], 4
      %s28 = int_to_ptr.vmem [resolvable:$true] %s27
      %33 = dma.hbm_to_vmem [thread:$0]  %s1, 1024, %s28, [#allocation7], 64, 64, 4
    $region9: #{tpu_custom_call.1} parent=1 // pred_fallthru
      _
    // Predicated region
    $region10: #{tpu_custom_call.1} parent=1 // pred_check
      _
    $region11: #{tpu_custom_call.1} parent=1 // pred_check_branch
      %35 = sbr.rel (0) target = $region13
    $region12: #{tpu_custom_call.1} parent=1 // pred_region
      _
    $region13: #{tpu_custom_call.1} parent=1 // pred_fallthru
      _
    // Predicated region
    $region14: #{tpu_custom_call.1} parent=1 // pred_check
      _
    $region15: #{tpu_custom_call.1} parent=1 // pred_check_branch
      %37 = sbr.rel (0) target = $region17
    $region16: #{tpu_custom_call.1} parent=1 // pred_region
      %s39 = ssub.s32 1024, 1024
      %40 = vsyncadd [#allocation7], %s39
      %s41 = sshll.u32 [#allocation8], 4
      %s42 = int_to_ptr.vmem [resolvable:$true] %s41
      %47 = dma.hbm_to_vmem [thread:$0]  %s3, 1024, %s42, [#allocation7], 64, 64, 4
    $region17: #{tpu_custom_call.1} parent=1 // pred_fallthru
      _
    // Predicated region
    $region18: #{tpu_custom_call.1} parent=1 // pred_check
      _
    $region19: #{tpu_custom_call.1} parent=1 // pred_check_branch
      %49 = sbr.rel (0) target = $region21
    $region20: #{tpu_custom_call.1} parent=1 // pred_region
      %50 = dma.done [#allocation4], 128
    $region21: #{tpu_custom_call.1} parent=1 // pred_fallthru
      _
    // Predicated region
    $region22: #{tpu_custom_call.1} parent=1 // pred_check
      _
    $region23: #{tpu_custom_call.1} parent=1 // pred_check_branch
      %52 = sbr.rel (0) target = $region25
    $region24: #{tpu_custom_call.1} parent=1 // pred_region
      %53 = dma.done [#allocation7], 1024
    $region25: #{tpu_custom_call.1} parent=1 // pred_fallthru
      _
    // Predicated region
    $region26: #{tpu_custom_call.1} parent=1 // pred_check
      _
    $region27: #{tpu_custom_call.1} parent=1 // pred_check_branch
      %55 = sbr.rel (0) target = $region29
    $region28: #{tpu_custom_call.1} parent=1 // pred_region
      %56 = dma.done [#allocation7], 1024
    $region29: #{tpu_custom_call.1} parent=1 // pred_fallthru
      _
    %p58 = scmp.eq.s32.totalorder 0, 0
    // Predicated region
    $region30: #{tpu_custom_call.1} parent=1 // pred_check
      %p59 = pneg %p58
    $region31: #{tpu_custom_call.1} parent=1 // pred_check_branch
      %61 = sbr.rel (%p59) target = $region33
    $region32: #{tpu_custom_call.1} parent=1 // pred_region
      %62 = vst [vmem:[#allocation2] sm:$0xff] 0.0
    $region33: #{tpu_custom_call.1} parent=1 // pred_fallthru
      _
    %v63 = vld [vmem:[#allocation2] sm:$0xff]
    %v64 = vld [vmem:[#allocation3] sm:$0xff]
    %v65 = vpack.c.bf16 %v64, %v64
    %v66 = vld [vmem:[#allocation6] sm:$0xf]
    %v67 = vld [vmem:[#allocation6 + $0x4] sm:$0xf]
    %v68 = vld [vmem:[#allocation6 + $0x8] sm:$0xf]
    %v69 = vld [vmem:[#allocation6 + $0xc] sm:$0xf]
    %v70 = vld [vmem:[#allocation6 + $0x10] sm:$0xf]
    %v71 = vld [vmem:[#allocation6 + $0x14] sm:$0xf]
    %v72 = vld [vmem:[#allocation6 + $0x18] sm:$0xf]
    %v73 = vld [vmem:[#allocation6 + $0x1c] sm:$0xf]
    %v74 = vld [vmem:[#allocation6 + $0x20] sm:$0xf]
    %v75 = vld [vmem:[#allocation6 + $0x24] sm:$0xf]
    %v76 = vld [vmem:[#allocation6 + $0x28] sm:$0xf]
    %v77 = vld [vmem:[#allocation6 + $0x2c] sm:$0xf]
    %v78 = vld [vmem:[#allocation6 + $0x30] sm:$0xf]
    %v79 = vld [vmem:[#allocation6 + $0x34] sm:$0xf]
    %v80 = vld [vmem:[#allocation6 + $0x38] sm:$0xf]
    %v81 = vld [vmem:[#allocation6 + $0x3c] sm:$0xf]
    %v98 = vunpack.c.l.b16 %v66
    %v99 = vunpack.c.l.b16 %v67
    %v100 = vunpack.c.l.b16 %v68
    %v101 = vunpack.c.l.b16 %v69
    %v102 = vunpack.c.l.b16 %v70
    %v103 = vunpack.c.l.b16 %v71
    %v104 = vunpack.c.l.b16 %v72
    %v105 = vunpack.c.l.b16 %v73
    %v106 = vunpack.c.l.b16 %v74
    %v107 = vunpack.c.l.b16 %v75
    %v108 = vunpack.c.l.b16 %v76
    %v109 = vunpack.c.l.b16 %v77
    %v110 = vunpack.c.l.b16 %v78
    %v111 = vunpack.c.l.b16 %v79
    %v112 = vunpack.c.l.b16 %v80
    %v113 = vunpack.c.l.b16 %v81
    %v114 = vpack.c.b16 %v99, %v98
    %v115 = vpack.c.b16 %v101, %v100
    %v116 = vpack.c.b16 %v103, %v102
    %v117 = vpack.c.b16 %v105, %v104
    %v118 = vpack.c.b16 %v107, %v106
    %v119 = vpack.c.b16 %v109, %v108
    %v120 = vpack.c.b16 %v111, %v110
    %v121 = vpack.c.b16 %v113, %v112
    %130 = vmatprep.subr.bf16.mxu0 0
    %131 = vmatpush1.bf16.msra.mxu0 %v114
    %132 = vmatprep.subr.bf16.mxu0 0
    %133 = vmatpush1.bf16.msra.mxu0 %v115
    %134 = vmatprep.subr.bf16.mxu0 0
    %135 = vmatpush1.bf16.msra.mxu0 %v116
    %136 = vmatprep.subr.bf16.mxu0 0
    %137 = vmatpush1.bf16.msra.mxu0 %v117
    %138 = vmatprep.subr.bf16.mxu0 0
    %139 = vmatpush1.bf16.msra.mxu0 %v118
    %140 = vmatprep.subr.bf16.mxu0 0
    %141 = vmatpush1.bf16.msra.mxu0 %v119
    %142 = vmatprep.subr.bf16.mxu0 0
    %143 = vmatpush1.bf16.msra.mxu0 %v120
    %144 = vmatprep.subr.bf16.mxu0 0
    %145 = vmatpush1.bf16.msra.mxu0 %v121
    %146 = vmatprep.subr.bf16.mxu0 0
    %147 = vmatpush1.bf16.msra.mxu0 0
    %148 = vmatprep.subr.bf16.mxu0 0
    %149 = vmatpush1.bf16.msra.mxu0 0
    %150 = vmatprep.subr.bf16.mxu0 0
    %151 = vmatpush1.bf16.msra.mxu0 0
    %152 = vmatprep.subr.bf16.mxu0 0
    %153 = vmatpush1.bf16.msra.mxu0 0
    %154 = vmatprep.subr.bf16.mxu0 0
    %155 = vmatpush1.bf16.msra.mxu0 0
    %156 = vmatprep.subr.bf16.mxu0 0
    %157 = vmatpush1.bf16.msra.mxu0 0
    %158 = vmatprep.subr.bf16.mxu0 0
    %159 = vmatpush1.bf16.msra.mxu0 0
    %160 = vmatprep.subr.bf16.mxu0 0
    %161 = vmatpush1.bf16.msra.mxu0 0
    %162 = vmatprep.mubr.bf16.mxu0 0
    %163 = vmatmul.mubr.bf16.gmra.mrb[0].mxu0 %v65
    %v164 = vpop.f32.mrb[0].mxu0
    %v165 = vadd.f32 0.0, %v164
    %v166 = vpop.f32.mrb[0].mxu0
    %v167 = vpop.f32.mrb[0].mxu0
    %v168 = vpop.f32.mrb[0].mxu0
    %169 = vdwg.mxu0
    %v170 = vadd.f32 %v63, %v165
    %171 = vst [vmem:[#allocation2] sm:$0xff] %v170
    // Predicated region
    $region34: #{tpu_custom_call.1} parent=1 // pred_check
      %p172 = pneg %p58
    $region35: #{tpu_custom_call.1} parent=1 // pred_check_branch
      %174 = sbr.rel (%p172) target = $region37
    $region36: #{tpu_custom_call.1} parent=1 // pred_region
      %v175 = vld [vmem:[#allocation2] sm:$0xff]
      %v176 = vld [vmem:[%s2] sm:$0x7]
      %v177 = vrot.slane %v175, 4
      %v178 = vadd.f32 %v175, %v177
      %v179 = vrot.slane %v178, 2
      %v180 = vadd.f32 %v178, %v179
      %v181 = vrot.slane %v180, 1
      %v182 = vadd.f32 %v180, %v181
      %v183 = vmul.f32 %v175, %v175
      %v184 = vrot.slane %v183, 4
      %v185 = vadd.f32 %v183, %v184
      %v186 = vrot.slane %v185, 2
      %v187 = vadd.f32 %v185, %v186
      %v188 = vrot.slane %v187, 1
      %v189 = vadd.f32 %v187, %v188
      %v190 = vmul.f32 %v182, 0.125
      %v191 = vmul.f32 %v189, 0.125
      %v192 = vmul.f32 %v190, %v190
      %v193 = vsub.f32 %v191, %v192
      %v194 = vmax.f32 %v193, 0.0
      %v195 = vadd.f32 %v194, 1e-05
      %v196 = vrsqrt.pop %v195
      %v197 = vmul.f32 %v176, %v196
      %v198 = vmul.f32 %v190, %v197
      %v200 = vrot.slane %v198, 7
      %v202 = vsub.f32 %v176, %v200
      %v203 = vlaneseq
      %v204 = vshrl.u32 %v203, 7
      %v205 = vsub.s32 0, %v204
      %v206 = vrot.slane %v197, %v205
      %v207 = vmul.f32 %v175, %v206
      %v208 = vlaneseq
      %v209 = vshrl.u32 %v208, 7
      %v210 = vsub.s32 1, %v209
      %v211 = vrot.slane %v202, %v210
      %v212 = vadd.f32 %v207, %v211
      %v213 = vmax.f32 %v212, 0.0
      %v214 = vpack.c.bf16 %v213, %v213
      %v215 = vld [vmem:[#allocation8] sm:$0xf]
      %v216 = vld [vmem:[#allocation8 + $0x4] sm:$0xf]
      %v217 = vld [vmem:[#allocation8 + $0x8] sm:$0xf]
      %v218 = vld [vmem:[#allocation8 + $0xc] sm:$0xf]
      %v219 = vld [vmem:[#allocation8 + $0x10] sm:$0xf]
      %v220 = vld [vmem:[#allocation8 + $0x14] sm:$0xf]
      %v221 = vld [vmem:[#allocation8 + $0x18] sm:$0xf]
      %v222 = vld [vmem:[#allocation8 + $0x1c] sm:$0xf]
      %v223 = vld [vmem:[#allocation8 + $0x20] sm:$0xf]
      %v224 = vld [vmem:[#allocation8 + $0x24] sm:$0xf]
      %v225 = vld [vmem:[#allocation8 + $0x28] sm:$0xf]
      %v226 = vld [vmem:[#allocation8 + $0x2c] sm:$0xf]
      %v227 = vld [vmem:[#allocation8 + $0x30] sm:$0xf]
      %v228 = vld [vmem:[#allocation8 + $0x34] sm:$0xf]
      %v229 = vld [vmem:[#allocation8 + $0x38] sm:$0xf]
      %v230 = vld [vmem:[#allocation8 + $0x3c] sm:$0xf]
      %v231 = vlaneseq
      %v232 = vshrl.u32 %v231, 7
      %v233 = vsub.s32 2, %v232
      %v234 = vrot.slane %v176, %v233
      %v251 = vunpack.c.l.b16 %v215
      %v252 = vunpack.c.l.b16 %v216
      %v253 = vunpack.c.l.b16 %v217
      %v254 = vunpack.c.l.b16 %v218
      %v255 = vunpack.c.l.b16 %v219
      %v256 = vunpack.c.l.b16 %v220
      %v257 = vunpack.c.l.b16 %v221
      %v258 = vunpack.c.l.b16 %v222
      %v259 = vunpack.c.l.b16 %v223
      %v260 = vunpack.c.l.b16 %v224
      %v261 = vunpack.c.l.b16 %v225
      %v262 = vunpack.c.l.b16 %v226
      %v263 = vunpack.c.l.b16 %v227
      %v264 = vunpack.c.l.b16 %v228
      %v265 = vunpack.c.l.b16 %v229
      %v266 = vunpack.c.l.b16 %v230
      %v267 = vpack.c.b16 %v252, %v251
      %v268 = vpack.c.b16 %v254, %v253
      %v269 = vpack.c.b16 %v256, %v255
      %v270 = vpack.c.b16 %v258, %v257
      %v271 = vpack.c.b16 %v260, %v259
      %v272 = vpack.c.b16 %v262, %v261
      %v273 = vpack.c.b16 %v264, %v263
      %v274 = vpack.c.b16 %v266, %v265
      %283 = vmatprep.subr.bf16.mxu0 0
      %284 = vmatpush1.bf16.msra.mxu0 %v267
      %285 = vmatprep.subr.bf16.mxu0 0
      %286 = vmatpush1.bf16.msra.mxu0 %v268
      %287 = vmatprep.subr.bf16.mxu0 0
      %288 = vmatpush1.bf16.msra.mxu0 %v269
      %289 = vmatprep.subr.bf16.mxu0 0
      %290 = vmatpush1.bf16.msra.mxu0 %v270
      %291 = vmatprep.subr.bf16.mxu0 0
      %292 = vmatpush1.bf16.msra.mxu0 %v271
      %293 = vmatprep.subr.bf16.mxu0 0
      %294 = vmatpush1.bf16.msra.mxu0 %v272
      %295 = vmatprep.subr.bf16.mxu0 0
      %296 = vmatpush1.bf16.msra.mxu0 %v273
      %297 = vmatprep.subr.bf16.mxu0 0
      %298 = vmatpush1.bf16.msra.mxu0 %v274
      %299 = vmatprep.subr.bf16.mxu0 0
      %300 = vmatpush1.bf16.msra.mxu0 0
      %301 = vmatprep.subr.bf16.mxu0 0
      %302 = vmatpush1.bf16.msra.mxu0 0
      %303 = vmatprep.subr.bf16.mxu0 0
      %304 = vmatpush1.bf16.msra.mxu0 0
      %305 = vmatprep.subr.bf16.mxu0 0
      %306 = vmatpush1.bf16.msra.mxu0 0
      %307 = vmatprep.subr.bf16.mxu0 0
      %308 = vmatpush1.bf16.msra.mxu0 0
      %309 = vmatprep.subr.bf16.mxu0 0
      %310 = vmatpush1.bf16.msra.mxu0 0
      %311 = vmatprep.subr.bf16.mxu0 0
      %312 = vmatpush1.bf16.msra.mxu0 0
      %313 = vmatprep.subr.bf16.mxu0 0
      %314 = vmatpush1.bf16.msra.mxu0 0
      %315 = vmatprep.mubr.bf16.mxu0 0
      %316 = vmatmul.mubr.bf16.gmra.mrb[0].mxu0 %v214
      %v317 = vpop.f32.mrb[0].mxu0
      %v318 = vadd.f32 %v234, %v317
      %v319 = vpop.f32.mrb[0].mxu0
      %v320 = vpop.f32.mrb[0].mxu0
      %v321 = vpop.f32.mrb[0].mxu0
      %322 = vdwg.mxu0
      %323 = vst [vmem:[#allocation9] sm:$0xff] %v318
    $region37: #{tpu_custom_call.1} parent=1 // pred_fallthru
      _
    // Predicated region
    $region38: #{tpu_custom_call.1} parent=1 // pred_check
      _
    $region39: #{tpu_custom_call.1} parent=1 // pred_check_branch
      %325 = sbr.rel (0) target = $region41
    $region40: #{tpu_custom_call.1} parent=1 // pred_region
      %s327 = ssub.s32 128, 128
      %328 = vsyncadd [#allocation5], %s327
      %s330 = sshll.u32 [#allocation9], 4
      %s331 = int_to_ptr.vmem [resolvable:$true] %s330
      %333 = dma.vmem_to_hbm [thread:$0]  %s331, 128, %s4, [#allocation5]
    $region41: #{tpu_custom_call.1} parent=1 // pred_fallthru
      _
    // Predicated region
    $region42: #{tpu_custom_call.1} parent=1 // pred_check
      _
    $region43: #{tpu_custom_call.1} parent=1 // pred_check_branch
      %335 = sbr.rel (0) target = $region45
    $region44: #{tpu_custom_call.1} parent=1 // pred_region
      %336 = dma.done [#allocation5], 128
    $region45: #{tpu_custom_call.1} parent=1 // pred_fallthru
      _
    %337 = vsyncpa [#allocation4], 1
    %338 = vsyncpa [#allocation7], 1
    %339 = vsyncpa [#allocation5], 1

</llo_original>
